<compile_context>
chip_gen: v7x
topology: tpu7x:2x2x1
jax: 0.10.0
libtpu: 0.0.40
codegen_flags: <defaults>
</compile_context>

<pallas_src>
import functools

import numpy as np
import jax
import jax.numpy as jnp
from jax.experimental import pallas as pl
from jax.experimental.pallas import tpu as pltpu


def _concat_kernel(c_offsets, c_sizes, *refs):
    """Store every input block into its static channel slab of the output block.

    refs = (*in_refs, out_ref). in_ref block is (b, C_i, T); out_ref is (b, C_total, T).
    Channel offsets/sizes are Python ints -> slices are free static Ref views.
    """
    *in_refs, out_ref = refs
    for in_ref, off, c in zip(in_refs, c_offsets, c_sizes):
        out_ref[:, off:off + c, :] = in_ref[...]


def pallas_channel_concat(tensors, *, small_limit_bytes=4 << 20,
                          target_block_bytes=4 << 20):
    """Concatenate a list of NCHW tensors along the channel dim with a Pallas kernel."""
    assert len(tensors) >= 1
    if len(tensors) == 1:
        return tensors[0]

    N, _, H, W = tensors[0].shape
    dtype = tensors[0].dtype
    for t in tensors:
        assert t.ndim == 4 and t.shape[0] == N and t.shape[2] == H and t.shape[3] == W
        assert t.dtype == dtype

    c_list = [int(t.shape[1]) for t in tensors]
    c_total = int(sum(c_list))
    c_offsets = tuple(int(x) for x in np.cumsum([0] + c_list[:-1]))
    HW = H * W
    itemsize = jnp.dtype(dtype).itemsize

    # Lane-dense view: last dim = H*W (contiguous reshape, free).
    flat_ins = [t.reshape(N, c, HW) for t, c in zip(tensors, c_list)]
    kernel = functools.partial(_concat_kernel, c_offsets, tuple(c_list))

    # Total bytes moved once (inputs + output), single-buffered.
    total_bytes = 2 * N * c_total * HW * itemsize

    if total_bytes <= small_limit_bytes:
        # Tiny feature maps: one block for everything; avoids ~0.35us/step overhead.
        grid = (1,)
        in_specs = [pl.BlockSpec((N, c, HW), lambda i: (0, 0, 0)) for c in c_list]
        out_spec = pl.BlockSpec((N, c_total, HW), lambda i: (0, 0, 0))
        dim_sem = ("arbitrary",)
        block_bytes = total_bytes
    else:
        # Spatial tile T: multiple of 128 that divides HW (no masked edge blocks).
        # If HW is not a multiple of 128, fall back to full-HW blocks per batch element.
        T = HW
        if HW % 128 == 0:
            T = max(128, min(HW, (target_block_bytes // (c_total * itemsize)) // 128 * 128))
            while HW % T != 0:
                T -= 128
        n_sp = HW // T
        grid = (N, n_sp)  # >=2 independent steps lets both v7x TensorCores work.
        in_specs = [pl.BlockSpec((1, c, T), lambda n, s: (n, 0, s)) for c in c_list]
        out_spec = pl.BlockSpec((1, c_total, T), lambda n, s: (n, 0, s))
        dim_sem = ("parallel", "parallel")
        block_bytes = 2 * c_total * T * itemsize
        # TODO(synk): for HW not a multiple of 128 with very large channel counts the
        # full-HW fallback block can be VMEM-heavy on v7x; could pad HW to 128 instead.

    # Double-buffered working set + headroom, clamped to sane bounds.
    vmem_limit = int(min(max(2 * block_bytes + (4 << 20), 16 << 20), 128 << 20))

    out_flat = pl.pallas_call(
        kernel,
        out_shape=jax.ShapeDtypeStruct((N, c_total, HW), dtype),
        grid_spec=pltpu.PrefetchScalarGridSpec(
            num_scalar_prefetch=0,
            grid=grid,
            in_specs=in_specs,
            out_specs=out_spec,
        ),
        compiler_params=pltpu.CompilerParams(
            dimension_semantics=dim_sem,
            vmem_limit_bytes=vmem_limit,
        ),
    )(*flat_ins)
    return out_flat.reshape(N, c_total, H, W)


class FeatureConcat:
    """JAX/Pallas equivalent of the PyTorch FeatureConcat module."""

    def __init__(self, layers):
        self.layers = layers
        self.multiple = len(layers) > 1

    def __call__(self, x, outputs):
        # `x` is unused by the reference forward (it only routes saved outputs).
        if self.multiple:
            return pallas_channel_concat([outputs[i] for i in self.layers])
        return outputs[self.layers[0]]


if __name__ == "__main__":
    key = jax.random.PRNGKey(0)
    k1, k2, k3, k4, k5 = jax.random.split(key, 5)

    # --- Case 1: small toy shapes (single-block path) -------------------------
    N, H, W = 2, 16, 16
    feat0 = jax.random.normal(k1, (N, 4, H, W), dtype=jnp.float32)
    feat1 = jax.random.normal(k2, (N, 8, H, W), dtype=jnp.float32)
    x = jax.random.normal(k3, (N, 4, H, W), dtype=jnp.float32)  # current input (unused)
    outputs = [feat0, feat1]

    module = FeatureConcat(layers=[0, 1])
    y = jax.block_until_ready(module(x, outputs))
    ref = jnp.concatenate([feat0, feat1], axis=1)
    assert y.shape == (N, 12, H, W)
    assert jnp.allclose(y, ref)

    # --- Case 2: single-layer (pass-through) ----------------------------------
    module_single = FeatureConcat(layers=[1])
    y1 = jax.block_until_ready(module_single(x, outputs))
    assert jnp.allclose(y1, feat1)

    # --- Case 3: exercise the spatially-tiled path (force tiny budgets) -------
    fa = jax.random.normal(k4, (1, 8, 16, 16), dtype=jnp.float32)
    fb = jax.random.normal(k5, (1, 16, 16, 16), dtype=jnp.float32)
    y2 = jax.block_until_ready(
        pallas_channel_concat(
            [fa, fb],
            small_limit_bytes=0,                 # force the tiled path
            target_block_bytes=24 * 4 * 128,     # -> T = 128, grid = (1, 2)
        )
    )
    ref2 = jnp.concatenate([fa, fb], axis=1)
    assert y2.shape == (1, 24, 16, 16)
    assert jnp.allclose(y2, ref2)

    print("KERNEL_OK")
</pallas_src>

<mosaic_0001>
module attributes {stable_mosaic.version = 11 : i64} {
  func.func @_concat_kernel(%arg0: i32, %arg1: memref<2x4x256xf32, #tpu.memory_space<vmem>>, %arg2: memref<2x8x256xf32, #tpu.memory_space<vmem>>, %arg3: memref<2x12x256xf32, #tpu.memory_space<vmem>>) attributes {dimension_semantics = [#tpu.dimension_semantics<arbitrary>], iteration_bounds = array<i64: 1>, scalar_prefetch = 0 : i64, scratch_operands = 0 : i64, tpu.core_type = #tpu.core_type<tc>, window_params = [{pipeline_mode = #tpu.pipeline_mode<synchronous>, transform_indices = @transform_0, window_bounds = array<i64: 2, 4, 256>}, {pipeline_mode = #tpu.pipeline_mode<synchronous>, transform_indices = @transform_1, window_bounds = array<i64: 2, 8, 256>}, {pipeline_mode = #tpu.pipeline_mode<synchronous>, transform_indices = @transform_2, window_bounds = array<i64: 2, 12, 256>}]} {
    %c0 = arith.constant 0 : index
    %c0_0 = arith.constant 0 : index
    %c0_1 = arith.constant 0 : index
    %0 = vector.load %arg1[%c0, %c0_0, %c0_1] : memref<2x4x256xf32, #tpu.memory_space<vmem>>, vector<2x4x256xf32>
    %c0_2 = arith.constant 0 : index
    %c0_3 = arith.constant 0 : index
    %c0_4 = arith.constant 0 : index
    %1 = vector.load %arg3[%c0_2, %c0_3, %c0_4] : memref<2x12x256xf32, #tpu.memory_space<vmem>>, vector<2x4x256xf32>
    tpu.vector_store %arg3[%c0_2, %c0_3, %c0_4], %0 {strides = array<i32>} : memref<2x12x256xf32, #tpu.memory_space<vmem>>, vector<2x4x256xf32>,
    %c0_5 = arith.constant 0 : index
    %c0_6 = arith.constant 0 : index
    %c0_7 = arith.constant 0 : index
    %2 = vector.load %arg2[%c0_5, %c0_6, %c0_7] : memref<2x8x256xf32, #tpu.memory_space<vmem>>, vector<2x8x256xf32>
    %c0_8 = arith.constant 0 : index
    %c4 = arith.constant 4 : index
    %c0_9 = arith.constant 0 : index
    %3 = vector.load %arg3[%c0_8, %c4, %c0_9] : memref<2x12x256xf32, #tpu.memory_space<vmem>>, vector<2x8x256xf32>
    tpu.vector_store %arg3[%c0_8, %c4, %c0_9], %2 {strides = array<i32>} : memref<2x12x256xf32, #tpu.memory_space<vmem>>, vector<2x8x256xf32>,
    return
  }
  func.func @transform_0(%arg0: i32) -> (i32, i32, i32) {
    %c0_i32 = arith.constant 0 : i32
    %c0_i32_0 = arith.constant 0 : i32
    %c0_i32_1 = arith.constant 0 : i32
    %c0_i32_2 = arith.constant 0 : i32
    return %c0_i32, %c0_i32_0, %c0_i32_1 : i32, i32, i32
  }
  func.func @transform_1(%arg0: i32) -> (i32, i32, i32) {
    %c0_i32 = arith.constant 0 : i32
    %c0_i32_0 = arith.constant 0 : i32
    %c0_i32_1 = arith.constant 0 : i32
    %c0_i32_2 = arith.constant 0 : i32
    return %c0_i32, %c0_i32_0, %c0_i32_1 : i32, i32, i32
  }
  func.func @transform_2(%arg0: i32) -> (i32, i32, i32) {
    %c0_i32 = arith.constant 0 : i32
    %c0_i32_0 = arith.constant 0 : i32
    %c0_i32_1 = arith.constant 0 : i32
    %c0_i32_2 = arith.constant 0 : i32
    return %c0_i32, %c0_i32_0, %c0_i32_1 : i32, i32, i32
  }
}

</mosaic_0001>

<llo_original>
// kernel: tpu_custom_call.1
$region0: #{tpu_custom_call.1}
  #allocation0 [shape = 'u32[]', space=smem, size = 0x4, offset = 0x4, fixed_abs, tag = 'smem constant byte address 0x4 - core index']
  #allocation1 [shape = 'u32[144,128]{1,0:T(1,128)}', space=vmem, size = 0x12000, scoped, tag = 'internal scratch']
  %s0 = inlined_call_operand.hbm [shape: f32[2,4,256], index: 0, kind: input, shape index: {}]
  %s1 = inlined_call_operand.hbm [shape: f32[2,8,256], index: 1, kind: input, shape index: {}]
  %s2 = inlined_call_operand.vmem [shape: f32[2,12,256], index: 2, kind: output, shape index: {}]
  %s3 = sld [smem:[#allocation0]]
  $region26: #{tpu_custom_call.1} parent=0
    _
  %s5 = ssub.s32 1, %s3
  %s6 = scalar_select 0, %s5, %s3
  $region1: #{tpu_custom_call.1} parent=0
    #allocation2 [shape = 'u8[8192]{0}', space=vmem, size = 0x2000, scoped, tag = 'input window, operand 0, single buffered']
    #allocation3 [shape = 's32[1]{0}', space=sflag, size = 0x4, scoped, tag = 'scoped memory for tpu_custom_call.1']
    #allocation4 [shape = 'u8[16384]{0}', space=vmem, size = 0x4000, scoped, tag = 'input window, operand 1, single buffered']
    #allocation5 [shape = 's32[1]{0}', space=sflag, size = 0x4, scoped, tag = 'scoped memory for tpu_custom_call.1']
    %7 = vsyncpa [#allocation3], 0
    %8 = vsyncpa [#allocation5], 0
    // Predicated region
    $region2: #{tpu_custom_call.1} parent=1 // pred_check
      _
    $region3: #{tpu_custom_call.1} parent=1 // pred_check_branch
      %10 = sbr.rel (0) target = $region5
    $region4: #{tpu_custom_call.1} parent=1 // pred_region
      %s12 = ssub.s32 256, 256
      %13 = vsyncadd [#allocation3], %s12
      %s14 = sshll.u32 [#allocation2], 4
      %s15 = int_to_ptr.vmem [resolvable:$true] %s14
      %20 = dma.hbm_to_vmem [thread:$0]  %s0, 256, %s15, [#allocation3], 128, 128, 8
    $region5: #{tpu_custom_call.1} parent=1 // pred_fallthru
      _
    // Predicated region
    $region6: #{tpu_custom_call.1} parent=1 // pred_check
      _
    $region7: #{tpu_custom_call.1} parent=1 // pred_check_branch
      %22 = sbr.rel (0) target = $region9
    $region8: #{tpu_custom_call.1} parent=1 // pred_region
      %s24 = ssub.s32 512, 512
      %25 = vsyncadd [#allocation5], %s24
      %s26 = sshll.u32 [#allocation4], 4
      %s27 = int_to_ptr.vmem [resolvable:$true] %s26
      %32 = dma.hbm_to_vmem [thread:$0]  %s1, 512, %s27, [#allocation5], 256, 256, 16
    $region9: #{tpu_custom_call.1} parent=1 // pred_fallthru
      _
    // Predicated region
    $region10: #{tpu_custom_call.1} parent=1 // pred_check
      _
    $region11: #{tpu_custom_call.1} parent=1 // pred_check_branch
      %34 = sbr.rel (0) target = $region13
    $region12: #{tpu_custom_call.1} parent=1 // pred_region
      %35 = dma.done [#allocation3], 256
    $region13: #{tpu_custom_call.1} parent=1 // pred_fallthru
      _
    // Predicated region
    $region14: #{tpu_custom_call.1} parent=1 // pred_check
      _
    $region15: #{tpu_custom_call.1} parent=1 // pred_check_branch
      %37 = sbr.rel (0) target = $region17
    $region16: #{tpu_custom_call.1} parent=1 // pred_region
      %38 = dma.done [#allocation5], 512
    $region17: #{tpu_custom_call.1} parent=1 // pred_fallthru
      _
    %v39 = vld [vmem:[#allocation2] sm:$0xff]
    %v40 = vld [vmem:[#allocation2 + $0x8] sm:$0xff]
    %v43 = vcombine.high %v39, %v39
    %v44 = vcombine.high %v40, %v40
    %47 = vst [vmem:[%s2] sm:$0xf] %v39
    %48 = vst [vmem:[%s2 + $0x8] sm:$0xf] %v43
    %49 = vst [vmem:[%s2 + $0x20] sm:$0xf] %v40
    %50 = vst [vmem:[%s2 + $0x28] sm:$0xf] %v44
    %v51 = vld [vmem:[#allocation4] sm:$0xff]
    %v52 = vld [vmem:[#allocation4 + $0x8] sm:$0xff]
    %v53 = vld [vmem:[#allocation4 + $0x10] sm:$0xff]
    %v54 = vld [vmem:[#allocation4 + $0x18] sm:$0xff]
    %v59 = vrot.slane %v51, 4
    %v60 = vrot.slane %v52, 4
    %v61 = vrot.slane %v53, 4
    %v62 = vrot.slane %v54, 4
    %67 = vst [vmem:[%s2] sm:$0xf0] %v59
    %68 = vst [vmem:[%s2 + $0x8] sm:$0xf0] %v60
    %69 = vst [vmem:[%s2 + $0x10] sm:$0xf] %v59
    %70 = vst [vmem:[%s2 + $0x18] sm:$0xf] %v60
    %71 = vst [vmem:[%s2 + $0x20] sm:$0xf0] %v61
    %72 = vst [vmem:[%s2 + $0x28] sm:$0xf0] %v62
    %73 = vst [vmem:[%s2 + $0x30] sm:$0xf] %v61
    %74 = vst [vmem:[%s2 + $0x38] sm:$0xf] %v62
    // Predicated region
    $region18: #{tpu_custom_call.1} parent=1 // pred_check
      _
    $region19: #{tpu_custom_call.1} parent=1 // pred_check_branch
      %76 = sbr.rel (0) target = $region21
    $region20: #{tpu_custom_call.1} parent=1 // pred_region
      _
    $region21: #{tpu_custom_call.1} parent=1 // pred_fallthru
      _
    // Predicated region
    $region22: #{tpu_custom_call.1} parent=1 // pred_check
      _
    $region23: #{tpu_custom_call.1} parent=1 // pred_check_branch
      %78 = sbr.rel (0) target = $region25
    $region24: #{tpu_custom_call.1} parent=1 // pred_region
      _
    $region25: #{tpu_custom_call.1} parent=1 // pred_fallthru
      _
    %79 = vsyncpa [#allocation3], 1
    %80 = vsyncpa [#allocation5], 1

</llo_original>
